<compile_context>
chip_gen: v6e
topology: v6e:2x2x1
jax: 0.10.0
libtpu: 0.0.40
codegen_flags: <defaults>
</compile_context>

<pallas_src>
import functools

import jax
import jax.numpy as jnp
from jax import lax
from jax.experimental import pallas as pl
from jax.experimental.pallas import tpu as pltpu


_INV_SQRT2 = 0.7071067811865476  # hoisted GELU constant


def _round_up(n, m):
    return ((n + m - 1) // m) * m


def _cdiv(a, b):
    return -(-a // b)


def _gelu(x, approximate):
    if approximate:
        # tanh formulation -> EUP slot (nearly free on v6e/v7x); gated behind
        # a flag because PyTorch F.gelu defaults to the exact-erf form.
        return jax.nn.gelu(x, approximate=True)
    return 0.5 * x * (1.0 + lax.erf(x * _INV_SQRT2))


def nonlinear_head_kernel(x_ref, w1_ref, b1_ref, w2_ref, b2_ref, o_ref, *,
                          gelu_approximate):
    # In-kernel cast to the MXU compute dtype (saves a wrapper-side HBM pass).
    x = x_ref[...].astype(w1_ref.dtype)                            # (tm, d_in)
    h = jnp.dot(x, w1_ref[...], preferred_element_type=jnp.float32)
    h = _gelu(h + b1_ref[...], gelu_approximate)                   # f32 elementwise
    out = jnp.dot(h.astype(w2_ref.dtype), w2_ref[...],
                  preferred_element_type=jnp.float32)
    # NOTE: the ragged last row tile computes on whatever the pipeline loaded
    # for out-of-bounds rows; those rows are never stored.  Safe as long as no
    # cross-row reduction is ever added to this kernel.
    o_ref[...] = (out + b2_ref[...]).astype(o_ref.dtype)


def pack_nonlinear_head_params(w1, b1, w2, b2, compute_dtype=jnp.bfloat16):
    """One-time (hot-path-hoisted) transpose/pad/cast of the head weights.

    PyTorch nn.Linear layout in: w1 (hidden, d_in), b1 (hidden,),
    w2 (out_dim, hidden), b2 (out_dim,).  hidden is zero-padded to a multiple
    of 128 (lane-dense h / resident weights); out_dim is deliberately NOT
    padded so narrow heads don't inflate HBM output writes.
    """
    hidden, d_in = w1.shape
    out_dim = w2.shape[0]
    hid_p = _round_up(hidden, 128)
    w1_p = jnp.zeros((d_in, hid_p), compute_dtype).at[:, :hidden].set(
        w1.T.astype(compute_dtype))
    b1_p = jnp.zeros((1, hid_p), jnp.float32).at[:, :hidden].set(
        b1.reshape(1, hidden).astype(jnp.float32))
    w2_p = jnp.zeros((hid_p, out_dim), compute_dtype).at[:hidden, :].set(
        w2.T.astype(compute_dtype))
    b2_p = b2.reshape(1, out_dim).astype(jnp.float32)
    return dict(w1=w1_p, b1=b1_p, w2=w2_p, b2=b2_p,
                d_in=d_in, hidden=hidden, hid_p=hid_p, out_dim=out_dim)


def _vmem_capacity_bytes():
    try:
        return int(pltpu.get_tpu_info().vmem_capacity_bytes)
    except Exception:
        return 64 << 20  # conservative default (v7x per-TensorCore VMEM)


def nonlinear_head(x, params, *, tm=1024, gelu_approximate=False,
                   single_buffer_weights=True):
    """x: (..., d_in); params from pack_nonlinear_head_params()."""
    *lead, d_in = x.shape
    assert d_in == params["d_in"], "input feature dim mismatch"
    hid_p, out_dim = params["hid_p"], params["out_dim"]
    w1_p, b1_p, w2_p, b2_p = params["w1"], params["b1"], params["w2"], params["b2"]

    out_dtype = x.dtype
    cdt = jnp.dtype(w1_p.dtype).itemsize
    xdt = jnp.dtype(x.dtype).itemsize
    odt = jnp.dtype(out_dtype).itemsize

    M = 1
    for s in lead:
        M *= s
    x2d = x.reshape(M, d_in)  # no cast here (done in-kernel)

    # ---- per-generation VMEM budget & row-tile selection --------------------
    phys_vmem = _vmem_capacity_bytes()
    # v5e/v6e (128 MiB) -> 96 MiB budget; v7x (64 MiB) -> 40 MiB budget.
    vmem_budget = max(16 << 20, min(phys_vmem - (24 << 20), 96 << 20))
    vmem_limit = max(32 << 20, min(vmem_budget + (8 << 20), phys_vmem))
    two_cores = phys_vmem <= (64 << 20)  # v7x heuristic: 2 TensorCores / chip

    w_bufs = 1 if single_buffer_weights else 2

    def _vmem_need(t):
        return (2 * t * d_in * xdt                                  # x tiles (dbl-buffered)
                + 2 * t * out_dim * odt                             # out tiles (dbl-buffered)
                + w_bufs * (d_in * hid_p + hid_p * out_dim) * cdt   # resident weights
                + w_bufs * (hid_p + out_dim) * 4                    # biases (f32)
                + t * hid_p * (4 + cdt)                             # f32 h + bf16 copy of h
                + t * d_in * cdt)                                   # bf16 copy of x

    tm = max(16, min(_round_up(int(tm), 16), _round_up(M, 16)))
    while tm > 128 and _vmem_need(tm) > vmem_budget:
        tm = max(128, _round_up(tm // 2, 16))

    # On a two-TensorCore chip the 1-D parallel grid is split across cores:
    # prefer an even tile count so the tail doesn't leave one core idle.
    n_tiles = _cdiv(M, tm)
    if two_cores and n_tiles > 1 and n_tiles % 2 == 1:
        tm_alt = _round_up(_cdiv(M, n_tiles + 1), 16)
        if tm_alt >= 16 and _cdiv(M, tm_alt) % 2 == 0:
            tm = tm_alt

    grid = (_cdiv(M, tm),)

    flops = 2 * M * (d_in * hid_p + hid_p * out_dim)
    bytes_accessed = (M * d_in * xdt + M * out_dim * odt
                      + (d_in * hid_p + hid_p * out_dim) * cdt
                      + (hid_p + out_dim) * 4)

    kernel_fn = functools.partial(nonlinear_head_kernel,
                                  gelu_approximate=gelu_approximate)

    def _make_in_specs(single_buffer):
        # Constant-index_map operands are DMA'd once; single-buffer them so
        # the dead second pipeline buffer doesn't eat VMEM (biggest win on v7x).
        wkw = {"pipeline_mode": pl.Buffered(1)} if single_buffer else {}
        return [
            pl.BlockSpec((tm, d_in), lambda i: (i, 0)),                # x rows
            pl.BlockSpec((d_in, hid_p), lambda i: (0, 0), **wkw),      # W1^T (resident)
            pl.BlockSpec((1, hid_p), lambda i: (0, 0), **wkw),         # b1
            pl.BlockSpec((hid_p, out_dim), lambda i: (0, 0), **wkw),   # W2^T (resident)
            pl.BlockSpec((1, out_dim), lambda i: (0, 0), **wkw),       # b2
        ]

    def _call(in_specs):
        return pl.pallas_call(
            kernel_fn,
            out_shape=jax.ShapeDtypeStruct((M, out_dim), out_dtype),
            grid_spec=pltpu.PrefetchScalarGridSpec(
                num_scalar_prefetch=0,
                grid=grid,
                in_specs=in_specs,
                out_specs=pl.BlockSpec((tm, out_dim), lambda i: (i, 0)),
            ),
            compiler_params=pltpu.CompilerParams(
                dimension_semantics=("parallel",),
                vmem_limit_bytes=int(vmem_limit)),
            cost_estimate=pl.CostEstimate(
                flops=int(flops),
                transcendentals=int(M * hid_p),
                bytes_accessed=int(bytes_accessed)),
        )(x2d, w1_p, b1_p, w2_p, b2_p)

    try:
        out2d = _call(_make_in_specs(single_buffer_weights))
    except Exception:
        # Fallback if pipeline_mode=pl.Buffered(1) is unsupported by this
        # jax/Mosaic version (only reachable in eager execution).
        out2d = _call(_make_in_specs(False))

    return out2d.reshape(*lead, out_dim)


def init_params(key, input_dim, out_dim, hidden):
    # deterministic synthetic init (nn.Linear-like uniform bounds)
    k1, k2, k3, k4 = jax.random.split(key, 4)
    lim1 = 1.0 / jnp.sqrt(input_dim)
    lim2 = 1.0 / jnp.sqrt(hidden)
    w1 = jax.random.uniform(k1, (hidden, input_dim), jnp.float32, -lim1, lim1)
    b1 = jax.random.uniform(k2, (hidden,), jnp.float32, -lim1, lim1)
    w2 = jax.random.uniform(k3, (out_dim, hidden), jnp.float32, -lim2, lim2)
    b2 = jax.random.uniform(k4, (out_dim,), jnp.float32, -lim2, lim2)
    return w1, b1, w2, b2


if __name__ == "__main__":
    batch, seq, input_dim, hidden, out_dim = 2, 8, 32, 32, 16
    key = jax.random.PRNGKey(0)
    kx, kp = jax.random.split(key)

    x = jax.random.normal(kx, (batch, seq, input_dim), jnp.float32)
    w1, b1, w2, b2 = init_params(kp, input_dim, out_dim, hidden)

    # One-time pre-pack of the weights (hoisted out of the hot path).
    params = pack_nonlinear_head_params(w1, b1, w2, b2)

    # Kernel (exact-erf GELU by default == PyTorch F.gelu semantics).
    y = nonlinear_head(x, params)
    y = jax.block_until_ready(y)

    # pure-JAX f32 reference (exact-erf GELU, matches PyTorch default)
    h_ref = x @ w1.T + b1
    h_ref = 0.5 * h_ref * (1.0 + lax.erf(h_ref * _INV_SQRT2))
    y_ref = h_ref @ w2.T + b2

    assert y.shape == (batch, seq, out_dim)
    # bf16 MXU inputs with f32 accumulation -> slightly looser tolerance.
    assert jnp.allclose(y, y_ref, atol=3e-2, rtol=3e-2)

    print("KERNEL_OK")
</pallas_src>

<mosaic_0001>
module attributes {stable_mosaic.version = 11 : i64} {
  func.func @nonlinear_head_kernel(%arg0: i32, %arg1: memref<16x32xf32, #tpu.memory_space<vmem>>, %arg2: memref<32x128xbf16, #tpu.memory_space<vmem>>, %arg3: memref<1x128xf32, #tpu.memory_space<vmem>>, %arg4: memref<128x16xbf16, #tpu.memory_space<vmem>>, %arg5: memref<1x16xf32, #tpu.memory_space<vmem>>, %arg6: memref<16x16xf32, #tpu.memory_space<vmem>>) attributes {dimension_semantics = [#tpu.dimension_semantics<parallel>], iteration_bounds = array<i64: 1>, scalar_prefetch = 0 : i64, scratch_operands = 0 : i64, tpu.core_type = #tpu.core_type<tc>, window_params = [{transform_indices = @transform_0, window_bounds = array<i64: 16, 32>}, {pipeline_mode = #tpu.pipeline_mode<synchronous>, transform_indices = @transform_1, window_bounds = array<i64: 32, 128>}, {pipeline_mode = #tpu.pipeline_mode<synchronous>, transform_indices = @transform_2, window_bounds = array<i64: 1, 128>}, {pipeline_mode = #tpu.pipeline_mode<synchronous>, transform_indices = @transform_3, window_bounds = array<i64: 128, 16>}, {pipeline_mode = #tpu.pipeline_mode<synchronous>, transform_indices = @transform_4, window_bounds = array<i64: 1, 16>}, {transform_indices = @transform_5, window_bounds = array<i64: 16, 16>}]} {
    %c0 = arith.constant 0 : index
    %c0_0 = arith.constant 0 : index
    %0 = vector.load %arg1[%c0, %c0_0] : memref<16x32xf32, #tpu.memory_space<vmem>>, vector<16x32xf32>
    %1 = arith.truncf %0 : vector<16x32xf32> to vector<16x32xbf16>
    %c0_1 = arith.constant 0 : index
    %c0_2 = arith.constant 0 : index
    %2 = vector.load %arg2[%c0_1, %c0_2] : memref<32x128xbf16, #tpu.memory_space<vmem>>, vector<32x128xbf16>
    %cst = arith.constant dense<0.000000e+00> : vector<16x128xf32>
    %3 = tpu.matmul %1, %2, %cst {dimension_numbers = #tpu.dot_dimension_numbers<[1], [0], [0], [1], [0, 0, 1, 1], [], []>} : vector<16x32xbf16>, vector<32x128xbf16>, vector<16x128xf32> -> vector<16x128xf32>
    %c0_3 = arith.constant 0 : index
    %c0_4 = arith.constant 0 : index
    %4 = vector.load %arg3[%c0_3, %c0_4] : memref<1x128xf32, #tpu.memory_space<vmem>>, vector<1x128xf32>
    %5 = vector.broadcast %4 : vector<1x128xf32> to vector<16x128xf32>
    %6 = arith.addf %3, %5 : vector<16x128xf32>
    %cst_5 = arith.constant 5.000000e-01 : f32
    %7 = vector.broadcast %cst_5 : f32 to vector<16x128xf32>
    %8 = arith.mulf %7, %6 : vector<16x128xf32>
    %cst_6 = arith.constant 0.707106769 : f32
    %9 = vector.broadcast %cst_6 : f32 to vector<16x128xf32>
    %10 = arith.mulf %6, %9 : vector<16x128xf32>
    %11 = math.erf %10 : vector<16x128xf32>
    %cst_7 = arith.constant 1.000000e+00 : f32
    %12 = vector.broadcast %cst_7 : f32 to vector<16x128xf32>
    %13 = arith.addf %12, %11 : vector<16x128xf32>
    %14 = arith.mulf %8, %13 : vector<16x128xf32>
    %15 = arith.truncf %14 : vector<16x128xf32> to vector<16x128xbf16>
    %c0_8 = arith.constant 0 : index
    %c0_9 = arith.constant 0 : index
    %16 = vector.load %arg4[%c0_8, %c0_9] : memref<128x16xbf16, #tpu.memory_space<vmem>>, vector<128x16xbf16>
    %cst_10 = arith.constant dense<0.000000e+00> : vector<16x16xf32>
    %17 = tpu.matmul %15, %16, %cst_10 {dimension_numbers = #tpu.dot_dimension_numbers<[1], [0], [0], [1], [0, 0, 1, 1], [], []>} : vector<16x128xbf16>, vector<128x16xbf16>, vector<16x16xf32> -> vector<16x16xf32>
    %c0_11 = arith.constant 0 : index
    %c0_12 = arith.constant 0 : index
    %18 = vector.load %arg5[%c0_11, %c0_12] : memref<1x16xf32, #tpu.memory_space<vmem>>, vector<1x16xf32>
    %19 = vector.broadcast %18 : vector<1x16xf32> to vector<16x16xf32>
    %20 = arith.addf %17, %19 : vector<16x16xf32>
    %c0_13 = arith.constant 0 : index
    %c0_14 = arith.constant 0 : index
    %21 = vector.load %arg6[%c0_13, %c0_14] : memref<16x16xf32, #tpu.memory_space<vmem>>, vector<16x16xf32>
    tpu.vector_store %arg6[%c0_13, %c0_14], %20 {strides = array<i32>} : memref<16x16xf32, #tpu.memory_space<vmem>>, vector<16x16xf32>,
    return
  }
  func.func @transform_0(%arg0: i32) -> (i32, i32) {
    %c0_i32 = arith.constant 0 : i32
    %c0_i32_0 = arith.constant 0 : i32
    return %arg0, %c0_i32 : i32, i32
  }
  func.func @transform_1(%arg0: i32) -> (i32, i32) {
    %c0_i32 = arith.constant 0 : i32
    %c0_i32_0 = arith.constant 0 : i32
    %c0_i32_1 = arith.constant 0 : i32
    return %c0_i32, %c0_i32_0 : i32, i32
  }
  func.func @transform_2(%arg0: i32) -> (i32, i32) {
    %c0_i32 = arith.constant 0 : i32
    %c0_i32_0 = arith.constant 0 : i32
    %c0_i32_1 = arith.constant 0 : i32
    return %c0_i32, %c0_i32_0 : i32, i32
  }
  func.func @transform_3(%arg0: i32) -> (i32, i32) {
    %c0_i32 = arith.constant 0 : i32
    %c0_i32_0 = arith.constant 0 : i32
    %c0_i32_1 = arith.constant 0 : i32
    return %c0_i32, %c0_i32_0 : i32, i32
  }
  func.func @transform_4(%arg0: i32) -> (i32, i32) {
    %c0_i32 = arith.constant 0 : i32
    %c0_i32_0 = arith.constant 0 : i32
    %c0_i32_1 = arith.constant 0 : i32
    return %c0_i32, %c0_i32_0 : i32, i32
  }
  func.func @transform_5(%arg0: i32) -> (i32, i32) {
    %c0_i32 = arith.constant 0 : i32
    %c0_i32_0 = arith.constant 0 : i32
    return %arg0, %c0_i32 : i32, i32
  }
}

module attributes {stable_mosaic.version = 11 : i64} {
  func.func @nonlinear_head_kernel(%arg0: i32, %arg1: memref<16x32xf32, #tpu.memory_space<vmem>>, %arg2: memref<32x128xbf16, #tpu.memory_space<vmem>>, %arg3: memref<1x128xf32, #tpu.memory_space<vmem>>, %arg4: memref<128x16xbf16, #tpu.memory_space<vmem>>, %arg5: memref<1x16xf32, #tpu.memory_space<vmem>>, %arg6: memref<16x16xf32, #tpu.memory_space<vmem>>) attributes {dimension_semantics = [#tpu.dimension_semantics<parallel>], iteration_bounds = array<i64: 1>, scalar_prefetch = 0 : i64, scratch_operands = 0 : i64, tpu.core_type = #tpu.core_type<tc>, window_params = [{transform_indices = @transform_0, window_bounds = array<i64: 16, 32>}, {pipeline_mode = #tpu.pipeline_mode<synchronous>, transform_indices = @transform_1, window_bounds = array<i64: 32, 128>}, {pipeline_mode = #tpu.pipeline_mode<synchronous>, transform_indices = @transform_2, window_bounds = array<i64: 1, 128>}, {pipeline_mode = #tpu.pipeline_mode<synchronous>, transform_indices = @transform_3, window_bounds = array<i64: 128, 16>}, {pipeline_mode = #tpu.pipeline_mode<synchronous>, transform_indices = @transform_4, window_bounds = array<i64: 1, 16>}, {transform_indices = @transform_5, window_bounds = array<i64: 16, 16>}]} {
    %c0 = arith.constant 0 : index
    %c0_0 = arith.constant 0 : index
    %0 = vector.load %arg1[%c0, %c0_0] : memref<16x32xf32, #tpu.memory_space<vmem>>, vector<16x32xf32>
    %1 = arith.truncf %0 : vector<16x32xf32> to vector<16x32xbf16>
    %c0_1 = arith.constant 0 : index
    %c0_2 = arith.constant 0 : index
    %2 = vector.load %arg2[%c0_1, %c0_2] : memref<32x128xbf16, #tpu.memory_space<vmem>>, vector<32x128xbf16>
    %cst = arith.constant dense<0.000000e+00> : vector<16x128xf32>
    %3 = tpu.matmul %1, %2, %cst {dimension_numbers = #tpu.dot_dimension_numbers<[1], [0], [0], [1], [0, 0, 1, 1], [], []>} : vector<16x32xbf16>, vector<32x128xbf16>, vector<16x128xf32> -> vector<16x128xf32>
    %c0_3 = arith.constant 0 : index
    %c0_4 = arith.constant 0 : index
    %4 = vector.load %arg3[%c0_3, %c0_4] : memref<1x128xf32, #tpu.memory_space<vmem>>, vector<1x128xf32>
    %5 = vector.broadcast %4 : vector<1x128xf32> to vector<16x128xf32>
    %6 = arith.addf %3, %5 : vector<16x128xf32>
    %cst_5 = arith.constant 5.000000e-01 : f32
    %7 = vector.broadcast %cst_5 : f32 to vector<16x128xf32>
    %8 = arith.mulf %7, %6 : vector<16x128xf32>
    %cst_6 = arith.constant 0.707106769 : f32
    %9 = vector.broadcast %cst_6 : f32 to vector<16x128xf32>
    %10 = arith.mulf %6, %9 : vector<16x128xf32>
    %11 = math.erf %10 : vector<16x128xf32>
    %cst_7 = arith.constant 1.000000e+00 : f32
    %12 = vector.broadcast %cst_7 : f32 to vector<16x128xf32>
    %13 = arith.addf %12, %11 : vector<16x128xf32>
    %14 = arith.mulf %8, %13 : vector<16x128xf32>
    %15 = arith.truncf %14 : vector<16x128xf32> to vector<16x128xbf16>
    %c0_8 = arith.constant 0 : index
    %c0_9 = arith.constant 0 : index
    %16 = vector.load %arg4[%c0_8, %c0_9] : memref<128x16xbf16, #tpu.memory_space<vmem>>, vector<128x16xbf16>
    %cst_10 = arith.constant dense<0.000000e+00> : vector<16x16xf32>
    %17 = tpu.matmul %15, %16, %cst_10 {dimension_numbers = #tpu.dot_dimension_numbers<[1], [0], [0], [1], [0, 0, 1, 1], [], []>} : vector<16x128xbf16>, vector<128x16xbf16>, vector<16x16xf32> -> vector<16x16xf32>
    %c0_11 = arith.constant 0 : index
    %c0_12 = arith.constant 0 : index
    %18 = vector.load %arg5[%c0_11, %c0_12] : memref<1x16xf32, #tpu.memory_space<vmem>>, vector<1x16xf32>
    %19 = vector.broadcast %18 : vector<1x16xf32> to vector<16x16xf32>
    %20 = arith.addf %17, %19 : vector<16x16xf32>
    %c0_13 = arith.constant 0 : index
    %c0_14 = arith.constant 0 : index
    %21 = vector.load %arg6[%c0_13, %c0_14] : memref<16x16xf32, #tpu.memory_space<vmem>>, vector<16x16xf32>
    tpu.vector_store %arg6[%c0_13, %c0_14], %20 {strides = array<i32>} : memref<16x16xf32, #tpu.memory_space<vmem>>, vector<16x16xf32>,
    return
  }
  func.func @transform_0(%arg0: i32) -> (i32, i32) {
    %c0_i32 = arith.constant 0 : i32
    %c0_i32_0 = arith.constant 0 : i32
    return %arg0, %c0_i32 : i32, i32
  }
  func.func @transform_1(%arg0: i32) -> (i32, i32) {
    %c0_i32 = arith.constant 0 : i32
    %c0_i32_0 = arith.constant 0 : i32
    %c0_i32_1 = arith.constant 0 : i32
    return %c0_i32, %c0_i32_0 : i32, i32
  }
  func.func @transform_2(%arg0: i32) -> (i32, i32) {
    %c0_i32 = arith.constant 0 : i32
    %c0_i32_0 = arith.constant 0 : i32
    %c0_i32_1 = arith.constant 0 : i32
    return %c0_i32, %c0_i32_0 : i32, i32
  }
  func.func @transform_3(%arg0: i32) -> (i32, i32) {
    %c0_i32 = arith.constant 0 : i32
    %c0_i32_0 = arith.constant 0 : i32
    %c0_i32_1 = arith.constant 0 : i32
    return %c0_i32, %c0_i32_0 : i32, i32
  }
  func.func @transform_4(%arg0: i32) -> (i32, i32) {
    %c0_i32 = arith.constant 0 : i32
    %c0_i32_0 = arith.constant 0 : i32
    %c0_i32_1 = arith.constant 0 : i32
    return %c0_i32, %c0_i32_0 : i32, i32
  }
  func.func @transform_5(%arg0: i32) -> (i32, i32) {
    %c0_i32 = arith.constant 0 : i32
    %c0_i32_0 = arith.constant 0 : i32
    return %arg0, %c0_i32 : i32, i32
  }
}

</mosaic_0001>

<llo_original>
// kernel: tpu_custom_call.1
$region0: #{tpu_custom_call.1}
  #allocation0 [shape = 'u32[]', space=smem, size = 0x4, offset = 0x4, fixed_abs, tag = 'smem constant byte address 0x4 - core index']
  #allocation1 [shape = 'u32[144,128]{1,0:T(1,128)}', space=vmem, size = 0x12000, scoped, tag = 'internal scratch']
  %s0 = inlined_call_operand.vmem [shape: f32[16,32], index: 0, kind: input, shape index: {}]
  %s1 = inlined_call_operand.vmem [shape: bf16[32,128], index: 1, kind: input, shape index: {}]
  %s2 = inlined_call_operand.vmem [shape: f32[1,128], index: 2, kind: input, shape index: {}]
  %s3 = inlined_call_operand.vmem [shape: bf16[128,16], index: 3, kind: input, shape index: {}]
  %s4 = inlined_call_operand.vmem [shape: f32[1,16], index: 4, kind: input, shape index: {}]
  %s5 = inlined_call_operand.hbm [shape: f32[16,16], index: 5, kind: output, shape index: {}]
  %s6 = sld [smem:[#allocation0]]
  $region30: #{tpu_custom_call.1} parent=0
    _
  %s8 = ssub.s32 1, %s6
  %s9 = scalar_select 0, %s8, %s6
  $region1: #{tpu_custom_call.1} parent=0
    #allocation2 [shape = 'u8[8192]{0}', space=vmem, size = 0x2000, scoped, tag = 'output window, operand 0, single buffered']
    #allocation3 [shape = 's32[1]{0}', space=sflag, size = 0x4, scoped, tag = 'scoped memory for tpu_custom_call.1']
    %10 = vsyncpa [#allocation3], 0
    // Predicated region
    $region2: #{tpu_custom_call.1} parent=1 // pred_check
      _
    $region3: #{tpu_custom_call.1} parent=1 // pred_check_branch
      %12 = sbr.rel (0) target = $region5
    $region4: #{tpu_custom_call.1} parent=1 // pred_region
      _
    $region5: #{tpu_custom_call.1} parent=1 // pred_fallthru
      _
    // Predicated region
    $region6: #{tpu_custom_call.1} parent=1 // pred_check
      _
    $region7: #{tpu_custom_call.1} parent=1 // pred_check_branch
      %14 = sbr.rel (0) target = $region9
    $region8: #{tpu_custom_call.1} parent=1 // pred_region
      _
    $region9: #{tpu_custom_call.1} parent=1 // pred_fallthru
      _
    // Predicated region
    $region10: #{tpu_custom_call.1} parent=1 // pred_check
      _
    $region11: #{tpu_custom_call.1} parent=1 // pred_check_branch
      %16 = sbr.rel (0) target = $region13
    $region12: #{tpu_custom_call.1} parent=1 // pred_region
      _
    $region13: #{tpu_custom_call.1} parent=1 // pred_fallthru
      _
    // Predicated region
    $region14: #{tpu_custom_call.1} parent=1 // pred_check
      _
    $region15: #{tpu_custom_call.1} parent=1 // pred_check_branch
      %18 = sbr.rel (0) target = $region17
    $region16: #{tpu_custom_call.1} parent=1 // pred_region
      _
    $region17: #{tpu_custom_call.1} parent=1 // pred_fallthru
      _
    // Predicated region
    $region18: #{tpu_custom_call.1} parent=1 // pred_check
      _
    $region19: #{tpu_custom_call.1} parent=1 // pred_check_branch
      %20 = sbr.rel (0) target = $region21
    $region20: #{tpu_custom_call.1} parent=1 // pred_region
      _
    $region21: #{tpu_custom_call.1} parent=1 // pred_fallthru
      _
    %v22 = vld [vmem:[%s0] sm:$0xff]
    %v23 = vld [vmem:[%s0 + $0x8] sm:$0xff]
    %v24 = vpack.c.bf16 %v23, %v22
    %v25 = vld [vmem:[%s1] sm:$0xf]
    %v26 = vld [vmem:[%s1 + $0x4] sm:$0xf]
    %v27 = vld [vmem:[%s1 + $0x8] sm:$0xf]
    %v28 = vld [vmem:[%s1 + $0xc] sm:$0xf]
    %v29 = vld [vmem:[%s2] sm:$0x1]
    %v31 = vlaneseq
    %v32 = vshrl.u32 %v31, 7
    %v33 = vsub.s32 0, %v32
    %v34 = vrot.slane %v29, %v33
    %v40 = vunpack.c.l.b16 %v25
    %v41 = vunpack.c.l.b16 %v26
    %v42 = vunpack.c.l.b16 %v27
    %v43 = vunpack.c.l.b16 %v28
    %v44 = vpack.c.b16 %v41, %v40
    %v45 = vpack.c.b16 %v43, %v42
    %vm48 = vcmask 261120
    %v50 = vsel %vm48, %v24, 0
    %52 = vmatprep.subr.bf16.mxu0 0
    %53 = vmatpush1.bf16.msra.mxu0 0
    %54 = vmatprep.subr.bf16.mxu0 0
    %55 = vmatpush1.bf16.msra.mxu0 0
    %56 = vmatprep.subr.bf16.mxu0 0
    %57 = vmatpush1.bf16.msra.mxu0 0
    %58 = vmatprep.subr.bf16.mxu0 0
    %59 = vmatpush1.bf16.msra.mxu0 0
    %60 = vmatprep.subr.bf16.mxu0 0
    %61 = vmatpush1.bf16.msra.mxu0 0
    %62 = vmatprep.subr.bf16.mxu0 0
    %63 = vmatpush1.bf16.msra.mxu0 0
    %64 = vmatprep.subr.bf16.mxu0 0
    %65 = vmatpush1.bf16.msra.mxu0 %v45
    %66 = vmatprep.subr.bf16.mxu0 0
    %67 = vmatpush1.bf16.msra.mxu0 %v44
    %68 = vmatprep.subr.bf16.mxu0 0
    %69 = vmatpush2.bf16.msra.mxu0 0
    %70 = vmatprep.subr.bf16.mxu0 0
    %71 = vmatpush2.bf16.msra.mxu0 0
    %72 = vmatprep.subr.bf16.mxu0 0
    %73 = vmatpush2.bf16.msra.mxu0 0
    %74 = vmatprep.subr.bf16.mxu0 0
    %75 = vmatpush2.bf16.msra.mxu0 0
    %76 = vmatprep.subr.bf16.mxu0 0
    %77 = vmatpush2.bf16.msra.mxu0 0
    %78 = vmatprep.subr.bf16.mxu0 0
    %79 = vmatpush2.bf16.msra.mxu0 0
    %80 = vmatprep.subr.bf16.mxu0 0
    %81 = vmatpush2.bf16.msra.mxu0 0
    %82 = vmatprep.subr.bf16.mxu0 0
    %83 = vmatpush2.bf16.msra.mxu0 0
    %84 = vmatprep.mubr.bf16.mxu0 0
    %85 = vmatmul.mubr.bf16.gmra.mxu0 %v50
    %v86 = vpop.f32.mrf.mxu0
    %v87 = vadd.f32 %v34, %v86
    %v88 = vpop.f32.mrf.mxu0
    %v89 = vpop.f32.mrf.mxu0
    %v90 = vadd.f32 %v34, %v89
    %v91 = vpop.f32.mrf.mxu0
    %92 = vdwg.mxu0
    %v93 = vmul.f32 %v87, 0.5
    %v94 = vmul.f32 %v90, 0.5
    %v95 = vmul.f32 %v87, 0.70710677
    %v96 = vmul.f32 %v90, 0.70710677
    %v97 = verf.f32.pop %v95
    %v98 = verf.f32.pop %v96
    %v99 = vadd.f32 %v97, 1.0
    %v100 = vadd.f32 %v98, 1.0
    %v101 = vmul.f32 %v93, %v99
    %v102 = vmul.f32 %v94, %v100
    %v103 = vpack.c.bf16 %v102, %v101
    %v104 = vld [vmem:[%s3] sm:$0xf]
    %v105 = vld [vmem:[%s3 + $0x4] sm:$0xf]
    %v106 = vld [vmem:[%s3 + $0x8] sm:$0xf]
    %v107 = vld [vmem:[%s3 + $0xc] sm:$0xf]
    %v108 = vld [vmem:[%s3 + $0x10] sm:$0xf]
    %v109 = vld [vmem:[%s3 + $0x14] sm:$0xf]
    %v110 = vld [vmem:[%s3 + $0x18] sm:$0xf]
    %v111 = vld [vmem:[%s3 + $0x1c] sm:$0xf]
    %v112 = vld [vmem:[%s3 + $0x20] sm:$0xf]
    %v113 = vld [vmem:[%s3 + $0x24] sm:$0xf]
    %v114 = vld [vmem:[%s3 + $0x28] sm:$0xf]
    %v115 = vld [vmem:[%s3 + $0x2c] sm:$0xf]
    %v116 = vld [vmem:[%s3 + $0x30] sm:$0xf]
    %v117 = vld [vmem:[%s3 + $0x34] sm:$0xf]
    %v118 = vld [vmem:[%s3 + $0x38] sm:$0xf]
    %v119 = vld [vmem:[%s3 + $0x3c] sm:$0xf]
    %v120 = vld [vmem:[%s4] sm:$0x1]
    %v122 = vlaneseq
    %v123 = vshrl.u32 %v122, 7
    %v124 = vsub.s32 0, %v123
    %v125 = vrot.slane %v120, %v124
    %v143 = vunpack.c.l.b16 %v104
    %v144 = vunpack.c.l.b16 %v105
    %v145 = vunpack.c.l.b16 %v106
    %v146 = vunpack.c.l.b16 %v107
    %v147 = vunpack.c.l.b16 %v108
    %v148 = vunpack.c.l.b16 %v109
    %v149 = vunpack.c.l.b16 %v110
    %v150 = vunpack.c.l.b16 %v111
    %v151 = vunpack.c.l.b16 %v112
    %v152 = vunpack.c.l.b16 %v113
    %v153 = vunpack.c.l.b16 %v114
    %v154 = vunpack.c.l.b16 %v115
    %v155 = vunpack.c.l.b16 %v116
    %v156 = vunpack.c.l.b16 %v117
    %v157 = vunpack.c.l.b16 %v118
    %v158 = vunpack.c.l.b16 %v119
    %v159 = vpack.c.b16 %v144, %v143
    %v160 = vpack.c.b16 %v146, %v145
    %v161 = vpack.c.b16 %v148, %v147
    %v162 = vpack.c.b16 %v150, %v149
    %v163 = vpack.c.b16 %v152, %v151
    %v164 = vpack.c.b16 %v154, %v153
    %v165 = vpack.c.b16 %v156, %v155
    %v166 = vpack.c.b16 %v158, %v157
    %175 = vmatprep.subr.bf16.mxu0 0
    %176 = vmatpush1.bf16.msra.mxu0 %v166
    %177 = vmatprep.subr.bf16.mxu0 0
    %178 = vmatpush1.bf16.msra.mxu0 %v165
    %179 = vmatprep.subr.bf16.mxu0 0
    %180 = vmatpush1.bf16.msra.mxu0 %v164
    %181 = vmatprep.subr.bf16.mxu0 0
    %182 = vmatpush1.bf16.msra.mxu0 %v163
    %183 = vmatprep.subr.bf16.mxu0 0
    %184 = vmatpush1.bf16.msra.mxu0 %v162
    %185 = vmatprep.subr.bf16.mxu0 0
    %186 = vmatpush1.bf16.msra.mxu0 %v161
    %187 = vmatprep.subr.bf16.mxu0 0
    %188 = vmatpush1.bf16.msra.mxu0 %v160
    %189 = vmatprep.subr.bf16.mxu0 0
    %190 = vmatpush1.bf16.msra.mxu0 %v159
    %191 = vmatprep.subr.bf16.mxu0 0
    %192 = vmatpush2.bf16.msra.mxu0 0
    %193 = vmatprep.subr.bf16.mxu0 0
    %194 = vmatpush2.bf16.msra.mxu0 0
    %195 = vmatprep.subr.bf16.mxu0 0
    %196 = vmatpush2.bf16.msra.mxu0 0
    %197 = vmatprep.subr.bf16.mxu0 0
    %198 = vmatpush2.bf16.msra.mxu0 0
    %199 = vmatprep.subr.bf16.mxu0 0
    %200 = vmatpush2.bf16.msra.mxu0 0
    %201 = vmatprep.subr.bf16.mxu0 0
    %202 = vmatpush2.bf16.msra.mxu0 0
    %203 = vmatprep.subr.bf16.mxu0 0
    %204 = vmatpush2.bf16.msra.mxu0 0
    %205 = vmatprep.subr.bf16.mxu0 0
    %206 = vmatpush2.bf16.msra.mxu0 0
    %207 = vmatprep.mubr.bf16.mxu0 0
    %208 = vmatmul.mubr.bf16.gmra.mxu0 %v103
    %v209 = vpop.f32.mrf.mxu0
    %v210 = vadd.f32 %v125, %v209
    %v211 = vpop.f32.mrf.mxu0
    %v212 = vpop.f32.mrf.mxu0
    %v213 = vadd.f32 %v125, %v212
    %v214 = vpop.f32.mrf.mxu0
    %215 = vdwg.mxu0
    %vm216 = vcmask 130048
    %217 = vst.msk [vmem:[#allocation2] sm:$0xff] %vm216, %v210
    %218 = vst.msk [vmem:[#allocation2 + $0x8] sm:$0xff] %vm216, %v213
    // Predicated region
    $region22: #{tpu_custom_call.1} parent=1 // pred_check
      _
    $region23: #{tpu_custom_call.1} parent=1 // pred_check_branch
      %220 = sbr.rel (0) target = $region25
    $region24: #{tpu_custom_call.1} parent=1 // pred_region
      %s222 = ssub.s32 256, 256
      %223 = vsyncadd [#allocation3], %s222
      %s224 = sshll.u32 [#allocation2], 4
      %s225 = int_to_ptr.vmem [resolvable:$true] %s224
      %230 = dma.vmem_to_hbm [thread:$0]  %s225, 256, %s5, [#allocation3], 128, 128, 8
    $region25: #{tpu_custom_call.1} parent=1 // pred_fallthru
      _
    // Predicated region
    $region26: #{tpu_custom_call.1} parent=1 // pred_check
      _
    $region27: #{tpu_custom_call.1} parent=1 // pred_check_branch
      %232 = sbr.rel (0) target = $region29
    $region28: #{tpu_custom_call.1} parent=1 // pred_region
      %233 = dma.done [#allocation3], 256
    $region29: #{tpu_custom_call.1} parent=1 // pred_fallthru
      _
    %234 = vsyncpa [#allocation3], 1

// kernel: tpu_custom_call.1
$region0: #{tpu_custom_call.1}
  #allocation0 [shape = 'u32[]', space=smem, size = 0x4, offset = 0x4, fixed_abs, tag = 'smem constant byte address 0x4 - core index']
  #allocation1 [shape = 'u32[144,128]{1,0:T(1,128)}', space=vmem, size = 0x12000, scoped, tag = 'internal scratch']
  %s0 = inlined_call_operand.vmem [shape: f32[16,32], index: 0, kind: input, shape index: {}]
  %s1 = inlined_call_operand.vmem [shape: bf16[32,128], index: 1, kind: input, shape index: {}]
  %s2 = inlined_call_operand.vmem [shape: f32[1,128], index: 2, kind: input, shape index: {}]
  %s3 = inlined_call_operand.vmem [shape: bf16[128,16], index: 3, kind: input, shape index: {}]
  %s4 = inlined_call_operand.vmem [shape: f32[1,16], index: 4, kind: input, shape index: {}]
  %s5 = inlined_call_operand.hbm [shape: f32[16,16], index: 5, kind: output, shape index: {}]
  %s6 = sld [smem:[#allocation0]]
  $region30: #{tpu_custom_call.1} parent=0
    _
  %s8 = ssub.s32 1, %s6
  %s9 = scalar_select 0, %s8, %s6
  $region1: #{tpu_custom_call.1} parent=0
    #allocation2 [shape = 'u8[8192]{0}', space=vmem, size = 0x2000, scoped, tag = 'output window, operand 0, single buffered']
    #allocation3 [shape = 's32[1]{0}', space=sflag, size = 0x4, scoped, tag = 'scoped memory for tpu_custom_call.1']
    %10 = vsyncpa [#allocation3], 0
    // Predicated region
    $region2: #{tpu_custom_call.1} parent=1 // pred_check
      _
    $region3: #{tpu_custom_call.1} parent=1 // pred_check_branch
      %12 = sbr.rel (0) target = $region5
    $region4: #{tpu_custom_call.1} parent=1 // pred_region
      _
    $region5: #{tpu_custom_call.1} parent=1 // pred_fallthru
      _
    // Predicated region
    $region6: #{tpu_custom_call.1} parent=1 // pred_check
      _
    $region7: #{tpu_custom_call.1} parent=1 // pred_check_branch
      %14 = sbr.rel (0) target = $region9
    $region8: #{tpu_custom_call.1} parent=1 // pred_region
      _
    $region9: #{tpu_custom_call.1} parent=1 // pred_fallthru
      _
    // Predicated region
    $region10: #{tpu_custom_call.1} parent=1 // pred_check
      _
    $region11: #{tpu_custom_call.1} parent=1 // pred_check_branch
      %16 = sbr.rel (0) target = $region13
    $region12: #{tpu_custom_call.1} parent=1 // pred_region
      _
    $region13: #{tpu_custom_call.1} parent=1 // pred_fallthru
      _
    // Predicated region
    $region14: #{tpu_custom_call.1} parent=1 // pred_check
      _
    $region15: #{tpu_custom_call.1} parent=1 // pred_check_branch
      %18 = sbr.rel (0) target = $region17
    $region16: #{tpu_custom_call.1} parent=1 // pred_region
      _
    $region17: #{tpu_custom_call.1} parent=1 // pred_fallthru
      _
    // Predicated region
    $region18: #{tpu_custom_call.1} parent=1 // pred_check
      _
    $region19: #{tpu_custom_call.1} parent=1 // pred_check_branch
      %20 = sbr.rel (0) target = $region21
    $region20: #{tpu_custom_call.1} parent=1 // pred_region
      _
    $region21: #{tpu_custom_call.1} parent=1 // pred_fallthru
      _
    %v22 = vld [vmem:[%s0] sm:$0xff]
    %v23 = vld [vmem:[%s0 + $0x8] sm:$0xff]
    %v24 = vpack.c.bf16 %v23, %v22
    %v25 = vld [vmem:[%s1] sm:$0xf]
    %v26 = vld [vmem:[%s1 + $0x4] sm:$0xf]
    %v27 = vld [vmem:[%s1 + $0x8] sm:$0xf]
    %v28 = vld [vmem:[%s1 + $0xc] sm:$0xf]
    %v29 = vld [vmem:[%s2] sm:$0x1]
    %v31 = vlaneseq
    %v32 = vshrl.u32 %v31, 7
    %v33 = vsub.s32 0, %v32
    %v34 = vrot.slane %v29, %v33
    %v40 = vunpack.c.l.b16 %v25
    %v41 = vunpack.c.l.b16 %v26
    %v42 = vunpack.c.l.b16 %v27
    %v43 = vunpack.c.l.b16 %v28
    %v44 = vpack.c.b16 %v41, %v40
    %v45 = vpack.c.b16 %v43, %v42
    %vm48 = vcmask 261120
    %v50 = vsel %vm48, %v24, 0
    %52 = vmatprep.subr.bf16.mxu0 0
    %53 = vmatpush1.bf16.msra.mxu0 0
    %54 = vmatprep.subr.bf16.mxu0 0
    %55 = vmatpush1.bf16.msra.mxu0 0
    %56 = vmatprep.subr.bf16.mxu0 0
    %57 = vmatpush1.bf16.msra.mxu0 0
    %58 = vmatprep.subr.bf16.mxu0 0
    %59 = vmatpush1.bf16.msra.mxu0 0
    %60 = vmatprep.subr.bf16.mxu0 0
    %61 = vmatpush1.bf16.msra.mxu0 0
    %62 = vmatprep.subr.bf16.mxu0 0
    %63 = vmatpush1.bf16.msra.mxu0 0
    %64 = vmatprep.subr.bf16.mxu0 0
    %65 = vmatpush1.bf16.msra.mxu0 %v45
    %66 = vmatprep.subr.bf16.mxu0 0
    %67 = vmatpush1.bf16.msra.mxu0 %v44
    %68 = vmatprep.subr.bf16.mxu0 0
    %69 = vmatpush2.bf16.msra.mxu0 0
    %70 = vmatprep.subr.bf16.mxu0 0
    %71 = vmatpush2.bf16.msra.mxu0 0
    %72 = vmatprep.subr.bf16.mxu0 0
    %73 = vmatpush2.bf16.msra.mxu0 0
    %74 = vmatprep.subr.bf16.mxu0 0
    %75 = vmatpush2.bf16.msra.mxu0 0
    %76 = vmatprep.subr.bf16.mxu0 0
    %77 = vmatpush2.bf16.msra.mxu0 0
    %78 = vmatprep.subr.bf16.mxu0 0
    %79 = vmatpush2.bf16.msra.mxu0 0
    %80 = vmatprep.subr.bf16.mxu0 0
    %81 = vmatpush2.bf16.msra.mxu0 0
    %82 = vmatprep.subr.bf16.mxu0 0
    %83 = vmatpush2.bf16.msra.mxu0 0
    %84 = vmatprep.mubr.bf16.mxu0 0
    %85 = vmatmul.mubr.bf16.gmra.mxu0 %v50
    %v86 = vpop.f32.mrf.mxu0
    %v87 = vadd.f32 %v34, %v86
    %v88 = vpop.f32.mrf.mxu0
    %v89 = vpop.f32.mrf.mxu0
    %v90 = vadd.f32 %v34, %v89
    %v91 = vpop.f32.mrf.mxu0
    %92 = vdwg.mxu0
    %v93 = vmul.f32 %v87, 0.5
    %v94 = vmul.f32 %v90, 0.5
    %v95 = vmul.f32 %v87, 0.70710677
    %v96 = vmul.f32 %v90, 0.70710677
    %v97 = verf.f32.pop %v95
    %v98 = verf.f32.pop %v96
    %v99 = vadd.f32 %v97, 1.0
    %v100 = vadd.f32 %v98, 1.0
    %v101 = vmul.f32 %v93, %v99
    %v102 = vmul.f32 %v94, %v100
    %v103 = vpack.c.bf16 %v102, %v101
    %v104 = vld [vmem:[%s3] sm:$0xf]
    %v105 = vld [vmem:[%s3 + $0x4] sm:$0xf]
    %v106 = vld [vmem:[%s3 + $0x8] sm:$0xf]
    %v107 = vld [vmem:[%s3 + $0xc] sm:$0xf]
    %v108 = vld [vmem:[%s3 + $0x10] sm:$0xf]
    %v109 = vld [vmem:[%s3 + $0x14] sm:$0xf]
    %v110 = vld [vmem:[%s3 + $0x18] sm:$0xf]
    %v111 = vld [vmem:[%s3 + $0x1c] sm:$0xf]
    %v112 = vld [vmem:[%s3 + $0x20] sm:$0xf]
    %v113 = vld [vmem:[%s3 + $0x24] sm:$0xf]
    %v114 = vld [vmem:[%s3 + $0x28] sm:$0xf]
    %v115 = vld [vmem:[%s3 + $0x2c] sm:$0xf]
    %v116 = vld [vmem:[%s3 + $0x30] sm:$0xf]
    %v117 = vld [vmem:[%s3 + $0x34] sm:$0xf]
    %v118 = vld [vmem:[%s3 + $0x38] sm:$0xf]
    %v119 = vld [vmem:[%s3 + $0x3c] sm:$0xf]
    %v120 = vld [vmem:[%s4] sm:$0x1]
    %v122 = vlaneseq
    %v123 = vshrl.u32 %v122, 7
    %v124 = vsub.s32 0, %v123
    %v125 = vrot.slane %v120, %v124
    %v143 = vunpack.c.l.b16 %v104
    %v144 = vunpack.c.l.b16 %v105
    %v145 = vunpack.c.l.b16 %v106
    %v146 = vunpack.c.l.b16 %v107
    %v147 = vunpack.c.l.b16 %v108
    %v148 = vunpack.c.l.b16 %v109
    %v149 = vunpack.c.l.b16 %v110
    %v150 = vunpack.c.l.b16 %v111
    %v151 = vunpack.c.l.b16 %v112
    %v152 = vunpack.c.l.b16 %v113
    %v153 = vunpack.c.l.b16 %v114
    %v154 = vunpack.c.l.b16 %v115
    %v155 = vunpack.c.l.b16 %v116
    %v156 = vunpack.c.l.b16 %v117
    %v157 = vunpack.c.l.b16 %v118
    %v158 = vunpack.c.l.b16 %v119
    %v159 = vpack.c.b16 %v144, %v143
    %v160 = vpack.c.b16 %v146, %v145
    %v161 = vpack.c.b16 %v148, %v147
    %v162 = vpack.c.b16 %v150, %v149
    %v163 = vpack.c.b16 %v152, %v151
    %v164 = vpack.c.b16 %v154, %v153
    %v165 = vpack.c.b16 %v156, %v155
    %v166 = vpack.c.b16 %v158, %v157
    %175 = vmatprep.subr.bf16.mxu0 0
    %176 = vmatpush1.bf16.msra.mxu0 %v166
    %177 = vmatprep.subr.bf16.mxu0 0
    %178 = vmatpush1.bf16.msra.mxu0 %v165
    %179 = vmatprep.subr.bf16.mxu0 0
    %180 = vmatpush1.bf16.msra.mxu0 %v164
    %181 = vmatprep.subr.bf16.mxu0 0
    %182 = vmatpush1.bf16.msra.mxu0 %v163
    %183 = vmatprep.subr.bf16.mxu0 0
    %184 = vmatpush1.bf16.msra.mxu0 %v162
    %185 = vmatprep.subr.bf16.mxu0 0
    %186 = vmatpush1.bf16.msra.mxu0 %v161
    %187 = vmatprep.subr.bf16.mxu0 0
    %188 = vmatpush1.bf16.msra.mxu0 %v160
    %189 = vmatprep.subr.bf16.mxu0 0
    %190 = vmatpush1.bf16.msra.mxu0 %v159
    %191 = vmatprep.subr.bf16.mxu0 0
    %192 = vmatpush2.bf16.msra.mxu0 0
    %193 = vmatprep.subr.bf16.mxu0 0
    %194 = vmatpush2.bf16.msra.mxu0 0
    %195 = vmatprep.subr.bf16.mxu0 0
    %196 = vmatpush2.bf16.msra.mxu0 0
    %197 = vmatprep.subr.bf16.mxu0 0
    %198 = vmatpush2.bf16.msra.mxu0 0
    %199 = vmatprep.subr.bf16.mxu0 0
    %200 = vmatpush2.bf16.msra.mxu0 0
    %201 = vmatprep.subr.bf16.mxu0 0
    %202 = vmatpush2.bf16.msra.mxu0 0
    %203 = vmatprep.subr.bf16.mxu0 0
    %204 = vmatpush2.bf16.msra.mxu0 0
    %205 = vmatprep.subr.bf16.mxu0 0
    %206 = vmatpush2.bf16.msra.mxu0 0
    %207 = vmatprep.mubr.bf16.mxu0 0
    %208 = vmatmul.mubr.bf16.gmra.mxu0 %v103
    %v209 = vpop.f32.mrf.mxu0
    %v210 = vadd.f32 %v125, %v209
    %v211 = vpop.f32.mrf.mxu0
    %v212 = vpop.f32.mrf.mxu0
    %v213 = vadd.f32 %v125, %v212
    %v214 = vpop.f32.mrf.mxu0
    %215 = vdwg.mxu0
    %vm216 = vcmask 130048
    %217 = vst.msk [vmem:[#allocation2] sm:$0xff] %vm216, %v210
    %218 = vst.msk [vmem:[#allocation2 + $0x8] sm:$0xff] %vm216, %v213
    // Predicated region
    $region22: #{tpu_custom_call.1} parent=1 // pred_check
      _
    $region23: #{tpu_custom_call.1} parent=1 // pred_check_branch
      %220 = sbr.rel (0) target = $region25
    $region24: #{tpu_custom_call.1} parent=1 // pred_region
      %s222 = ssub.s32 256, 256
      %223 = vsyncadd [#allocation3], %s222
      %s224 = sshll.u32 [#allocation2], 4
      %s225 = int_to_ptr.vmem [resolvable:$true] %s224
      %230 = dma.vmem_to_hbm [thread:$0]  %s225, 256, %s5, [#allocation3], 128, 128, 8
    $region25: #{tpu_custom_call.1} parent=1 // pred_fallthru
      _
    // Predicated region
    $region26: #{tpu_custom_call.1} parent=1 // pred_check
      _
    $region27: #{tpu_custom_call.1} parent=1 // pred_check_branch
      %232 = sbr.rel (0) target = $region29
    $region28: #{tpu_custom_call.1} parent=1 // pred_region
      %233 = dma.done [#allocation3], 256
    $region29: #{tpu_custom_call.1} parent=1 // pred_fallthru
      _
    %234 = vsyncpa [#allocation3], 1

</llo_original>
